<compile_context>
chip_gen: v5e
topology: v5e:2x2
jax: 0.10.0
libtpu: 0.0.40
codegen_flags: <defaults>
</compile_context>

<pallas_src>
import jax
import jax.numpy as jnp
from jax import lax
from jax.experimental import pallas as pl
from jax.experimental.pallas import tpu as pltpu

# ----- small shapes consistent with the module -----
BATCH = 2
SEQ = 8
HIDDEN = 32
MAX_POS = 16          # max_position_embeddings
LN_EPS = 1e-12        # layer_norm_eps


# ---------------------------------------------------------------------------
# Pallas kernel: whole batch, fused add + LayerNorm (dropout = identity)
# ---------------------------------------------------------------------------
def embeddings_kernel(x_ref, pos_ref, gamma_ref, beta_ref, out_ref):
    x = x_ref[...]                    # (B, S, H)  float "input_ids" (already embedded)
    pos = pos_ref[...]                # (S, H)     rows 0..S-1 of the position table

    # embeddings = input_ids + position_embeddings (broadcast over batch)
    emb = x + pos[None, :, :]

    # TransLayerNorm: u = mean, s = mean((x-u)^2), (x-u)*rsqrt(s+eps)*gamma + beta
    u = jnp.mean(emb, axis=-1, keepdims=True)
    c = emb - u
    s = jnp.mean(c * c, axis=-1, keepdims=True)
    xn = c * lax.rsqrt(s + LN_EPS)                   # rsqrt -> EUP slot, VALU stays free
    out = gamma_ref[...] * xn + beta_ref[...]        # (1,H) broadcasts over (B,S,H)

    # Dropout is identity at inference.
    out_ref[...] = out.astype(out_ref.dtype)


def trans_embeddings(x, pos_table, gamma, beta):
    """x: (B, S, H) f32; pos_table: (P, H); gamma/beta: (1, H)."""
    B, S, H = x.shape
    P, _ = pos_table.shape
    assert S <= P, "sequence length exceeds max_position_embeddings"

    return pl.pallas_call(
        embeddings_kernel,
        out_shape=jax.ShapeDtypeStruct((B, S, H), x.dtype),
        grid=(1,),  # single step: whole problem fits trivially in VMEM
        in_specs=[
            pl.BlockSpec((B, S, H), lambda i: (0, 0, 0)),  # full activation
            pl.BlockSpec((S, H), lambda i: (0, 0)),        # first S rows of (P,H) table
                                                           # == the arange(S) gather
            pl.BlockSpec((1, H), lambda i: (0, 0)),        # gamma
            pl.BlockSpec((1, H), lambda i: (0, 0)),        # beta
        ],
        out_specs=pl.BlockSpec((B, S, H), lambda i: (0, 0, 0)),
        compiler_params=pltpu.CompilerParams(
            dimension_semantics=("arbitrary",)),
    )(x, pos_table, gamma, beta)


# ---------------------------------------------------------------------------
# Pure-JAX reference (mirrors the PyTorch forward exactly)
# ---------------------------------------------------------------------------
def reference(x, pos_table, gamma, beta):
    B, S, H = x.shape
    position_ids = jnp.arange(S)                     # (S,)
    pos = pos_table[position_ids]                    # (S, H) embedding lookup
    emb = x + pos[None, :, :]
    u = emb.mean(-1, keepdims=True)
    s = ((emb - u) ** 2).mean(-1, keepdims=True)
    xn = (emb - u) / jnp.sqrt(s + LN_EPS)
    return gamma * xn + beta                         # dropout = identity


if __name__ == "__main__":
    key = jax.random.PRNGKey(0)
    kx, kp, kg, kb = jax.random.split(key, 4)

    # "input_ids" in the module is added to (B,S,H) position embeddings, so it is a
    # float (B, S, H) tensor of already-embedded inputs.
    x = jax.random.normal(kx, (BATCH, SEQ, HIDDEN), jnp.float32)
    pos_table = jax.random.normal(kp, (MAX_POS, HIDDEN), jnp.float32) * 0.02
    gamma = 1.0 + 0.1 * jax.random.normal(kg, (1, HIDDEN), jnp.float32)
    beta = 0.01 * jax.random.normal(kb, (1, HIDDEN), jnp.float32)

    out = trans_embeddings(x, pos_table, gamma, beta)
    out = jax.block_until_ready(out)

    ref = reference(x, pos_table, gamma, beta)
    assert out.shape == (BATCH, SEQ, HIDDEN)
    assert jnp.allclose(out, ref, atol=1e-5, rtol=1e-5), "kernel/reference mismatch"

    print("KERNEL_OK")
</pallas_src>

<mosaic_0001>
module attributes {stable_mosaic.version = 11 : i64} {
  func.func @embeddings_kernel(%arg0: i32, %arg1: memref<2x8x32xf32, #tpu.memory_space<vmem>>, %arg2: memref<8x32xf32, #tpu.memory_space<vmem>>, %arg3: memref<1x32xf32, #tpu.memory_space<vmem>>, %arg4: memref<1x32xf32, #tpu.memory_space<vmem>>, %arg5: memref<2x8x32xf32, #tpu.memory_space<vmem>>) attributes {dimension_semantics = [#tpu.dimension_semantics<arbitrary>], iteration_bounds = array<i64: 1>, scalar_prefetch = 0 : i64, scratch_operands = 0 : i64, tpu.core_type = #tpu.core_type<tc>, window_params = [{pipeline_mode = #tpu.pipeline_mode<synchronous>, transform_indices = @transform_0, window_bounds = array<i64: 2, 8, 32>}, {transform_indices = @transform_1, window_bounds = array<i64: 8, 32>}, {pipeline_mode = #tpu.pipeline_mode<synchronous>, transform_indices = @transform_2, window_bounds = array<i64: 1, 32>}, {pipeline_mode = #tpu.pipeline_mode<synchronous>, transform_indices = @transform_3, window_bounds = array<i64: 1, 32>}, {pipeline_mode = #tpu.pipeline_mode<synchronous>, transform_indices = @transform_4, window_bounds = array<i64: 2, 8, 32>}]} {
    %c0 = arith.constant 0 : index
    %c0_0 = arith.constant 0 : index
    %c0_1 = arith.constant 0 : index
    %0 = vector.load %arg1[%c0, %c0_0, %c0_1] : memref<2x8x32xf32, #tpu.memory_space<vmem>>, vector<2x8x32xf32>
    %c0_2 = arith.constant 0 : index
    %c0_3 = arith.constant 0 : index
    %1 = vector.load %arg2[%c0_2, %c0_3] : memref<8x32xf32, #tpu.memory_space<vmem>>, vector<8x32xf32>
    %2 = vector.shape_cast %1 : vector<8x32xf32> to vector<1x8x32xf32>
    %3 = vector.broadcast %2 : vector<1x8x32xf32> to vector<2x8x32xf32>
    %4 = arith.addf %0, %3 : vector<2x8x32xf32>
    %cst = arith.constant dense<0.000000e+00> : vector<2x8xf32>
    %5 = vector.multi_reduction <add>, %4, %cst [2] : vector<2x8x32xf32> to vector<2x8xf32>
    %6 = vector.shape_cast %5 : vector<2x8xf32> to vector<2x8x1xf32>
    %cst_4 = arith.constant 3.200000e+01 : f32
    %7 = vector.broadcast %cst_4 : f32 to vector<2x8x1xf32>
    %8 = arith.divf %6, %7 : vector<2x8x1xf32>
    %9 = vector.broadcast %8 : vector<2x8x1xf32> to vector<2x8x32xf32>
    %10 = arith.subf %4, %9 : vector<2x8x32xf32>
    %11 = arith.mulf %10, %10 : vector<2x8x32xf32>
    %cst_5 = arith.constant dense<0.000000e+00> : vector<2x8xf32>
    %12 = vector.multi_reduction <add>, %11, %cst_5 [2] : vector<2x8x32xf32> to vector<2x8xf32>
    %13 = vector.shape_cast %12 : vector<2x8xf32> to vector<2x8x1xf32>
    %cst_6 = arith.constant 3.200000e+01 : f32
    %14 = vector.broadcast %cst_6 : f32 to vector<2x8x1xf32>
    %15 = arith.divf %13, %14 : vector<2x8x1xf32>
    %cst_7 = arith.constant 9.99999996E-13 : f32
    %16 = vector.broadcast %cst_7 : f32 to vector<2x8x1xf32>
    %17 = arith.addf %15, %16 : vector<2x8x1xf32>
    %18 = math.rsqrt %17 : vector<2x8x1xf32>
    %19 = vector.broadcast %18 : vector<2x8x1xf32> to vector<2x8x32xf32>
    %20 = arith.mulf %10, %19 : vector<2x8x32xf32>
    %c0_8 = arith.constant 0 : index
    %c0_9 = arith.constant 0 : index
    %21 = vector.load %arg3[%c0_8, %c0_9] : memref<1x32xf32, #tpu.memory_space<vmem>>, vector<1x32xf32>
    %22 = vector.shape_cast %21 : vector<1x32xf32> to vector<1x1x32xf32>
    %23 = vector.broadcast %22 : vector<1x1x32xf32> to vector<2x8x32xf32>
    %24 = arith.mulf %23, %20 : vector<2x8x32xf32>
    %c0_10 = arith.constant 0 : index
    %c0_11 = arith.constant 0 : index
    %25 = vector.load %arg4[%c0_10, %c0_11] : memref<1x32xf32, #tpu.memory_space<vmem>>, vector<1x32xf32>
    %26 = vector.shape_cast %25 : vector<1x32xf32> to vector<1x1x32xf32>
    %27 = vector.broadcast %26 : vector<1x1x32xf32> to vector<2x8x32xf32>
    %28 = arith.addf %24, %27 : vector<2x8x32xf32>
    %c0_12 = arith.constant 0 : index
    %c0_13 = arith.constant 0 : index
    %c0_14 = arith.constant 0 : index
    %29 = vector.load %arg5[%c0_12, %c0_13, %c0_14] : memref<2x8x32xf32, #tpu.memory_space<vmem>>, vector<2x8x32xf32>
    tpu.vector_store %arg5[%c0_12, %c0_13, %c0_14], %28 {strides = array<i32>} : memref<2x8x32xf32, #tpu.memory_space<vmem>>, vector<2x8x32xf32>,
    return
  }
  func.func @transform_0(%arg0: i32) -> (i32, i32, i32) {
    %c0_i32 = arith.constant 0 : i32
    %c0_i32_0 = arith.constant 0 : i32
    %c0_i32_1 = arith.constant 0 : i32
    %c0_i32_2 = arith.constant 0 : i32
    return %c0_i32, %c0_i32_0, %c0_i32_1 : i32, i32, i32
  }
  func.func @transform_1(%arg0: i32) -> (i32, i32) {
    %c0_i32 = arith.constant 0 : i32
    %c0_i32_0 = arith.constant 0 : i32
    %c0_i32_1 = arith.constant 0 : i32
    return %c0_i32, %c0_i32_0 : i32, i32
  }
  func.func @transform_2(%arg0: i32) -> (i32, i32) {
    %c0_i32 = arith.constant 0 : i32
    %c0_i32_0 = arith.constant 0 : i32
    %c0_i32_1 = arith.constant 0 : i32
    return %c0_i32, %c0_i32_0 : i32, i32
  }
  func.func @transform_3(%arg0: i32) -> (i32, i32) {
    %c0_i32 = arith.constant 0 : i32
    %c0_i32_0 = arith.constant 0 : i32
    %c0_i32_1 = arith.constant 0 : i32
    return %c0_i32, %c0_i32_0 : i32, i32
  }
  func.func @transform_4(%arg0: i32) -> (i32, i32, i32) {
    %c0_i32 = arith.constant 0 : i32
    %c0_i32_0 = arith.constant 0 : i32
    %c0_i32_1 = arith.constant 0 : i32
    %c0_i32_2 = arith.constant 0 : i32
    return %c0_i32, %c0_i32_0, %c0_i32_1 : i32, i32, i32
  }
}

</mosaic_0001>

<llo_original>
// kernel: tpu_custom_call.1
$region0: #{tpu_custom_call.1}
  #allocation0 [shape = 'u32[]', space=smem, size = 0x4, offset = 0x4, fixed_abs, tag = 'smem constant byte address 0x4 - core index']
  #allocation1 [shape = 'u32[72,128]{1,0:T(1,128)}', space=vmem, size = 0x9000, scoped, tag = 'internal scratch']
  %s0 = inlined_call_operand.hbm [shape: f32[2,8,32], index: 0, kind: input, shape index: {}]
  %s1 = inlined_call_operand.hbm [shape: f32[16,32], index: 1, kind: input, shape index: {}]
  %s2 = inlined_call_operand.vmem [shape: f32[1,32], index: 2, kind: input, shape index: {}]
  %s3 = inlined_call_operand.vmem [shape: f32[1,32], index: 3, kind: input, shape index: {}]
  %s4 = inlined_call_operand.hbm [shape: f32[2,8,32], index: 4, kind: output, shape index: {}]
  %s5 = sld [smem:[#allocation0]]
  $region34: #{tpu_custom_call.1} parent=0
    _
  %s7 = ssub.s32 1, %s5
  %s8 = scalar_select 0, %s7, %s5
  $region1: #{tpu_custom_call.1} parent=0
    #allocation2 [shape = 'u8[8192]{0}', space=vmem, size = 0x2000, scoped, tag = 'input window, operand 0, single buffered']
    #allocation3 [shape = 's32[1]{0}', space=sflag, size = 0x4, scoped, tag = 'scoped memory for tpu_custom_call.1']
    #allocation4 [shape = 's32[1]{0}', space=sflag, size = 0x4, scoped, tag = 'scoped memory for tpu_custom_call.1']
    #allocation5 [shape = 'u8[4096]{0}', space=vmem, size = 0x1000, scoped, tag = 'input window, operand 1, single buffered']
    #allocation6 [shape = 's32[1]{0}', space=sflag, size = 0x4, scoped, tag = 'scoped memory for tpu_custom_call.1']
    #allocation7 [shape = 'u8[8192]{0}', space=vmem, size = 0x2000, scoped, tag = 'output window, operand 0, single buffered']
    %9 = vsyncpa [#allocation3], 0
    %10 = vsyncpa [#allocation6], 0
    %11 = vsyncpa [#allocation4], 0
    // Predicated region
    $region2: #{tpu_custom_call.1} parent=1 // pred_check
      _
    $region3: #{tpu_custom_call.1} parent=1 // pred_check_branch
      %13 = sbr.rel (0) target = $region5
    $region4: #{tpu_custom_call.1} parent=1 // pred_region
      %15 = vsyncadd [#allocation3], 0
      %s16 = sshll.u32 %s0, 4
      %s17 = int_to_ptr.hbm [resolvable:$true] %s16
      %s18 = sshll.u32 [#allocation2], 4
      %s19 = int_to_ptr.vmem [resolvable:$true] %s18
      %24 = dma.hbm_to_vmem [thread:$0]  %s17, 256, %s19, [#allocation3], 128, 128, 8
    $region5: #{tpu_custom_call.1} parent=1 // pred_fallthru
      _
    // Predicated region
    $region6: #{tpu_custom_call.1} parent=1 // pred_check
      _
    $region7: #{tpu_custom_call.1} parent=1 // pred_check_branch
      %26 = sbr.rel (0) target = $region9
    $region8: #{tpu_custom_call.1} parent=1 // pred_region
      %28 = vsyncadd [#allocation6], 0
      %s30 = sshll.u32 %s1, 4
      %s31 = int_to_ptr.hbm [resolvable:$true] %s30
      %s32 = sshll.u32 [#allocation5], 4
      %s33 = int_to_ptr.vmem [resolvable:$true] %s32
      %35 = dma.hbm_to_vmem [thread:$0]  %s31, 128, %s33, [#allocation6]
    $region9: #{tpu_custom_call.1} parent=1 // pred_fallthru
      _
    // Predicated region
    $region10: #{tpu_custom_call.1} parent=1 // pred_check
      _
    $region11: #{tpu_custom_call.1} parent=1 // pred_check_branch
      %37 = sbr.rel (0) target = $region13
    $region12: #{tpu_custom_call.1} parent=1 // pred_region
      _
    $region13: #{tpu_custom_call.1} parent=1 // pred_fallthru
      _
    // Predicated region
    $region14: #{tpu_custom_call.1} parent=1 // pred_check
      _
    $region15: #{tpu_custom_call.1} parent=1 // pred_check_branch
      %39 = sbr.rel (0) target = $region17
    $region16: #{tpu_custom_call.1} parent=1 // pred_region
      _
    $region17: #{tpu_custom_call.1} parent=1 // pred_fallthru
      _
    // Predicated region
    $region18: #{tpu_custom_call.1} parent=1 // pred_check
      _
    $region19: #{tpu_custom_call.1} parent=1 // pred_check_branch
      %41 = sbr.rel (0) target = $region21
    $region20: #{tpu_custom_call.1} parent=1 // pred_region
      %43 = dma.done [#allocation3], 256
    $region21: #{tpu_custom_call.1} parent=1 // pred_fallthru
      _
    // Predicated region
    $region22: #{tpu_custom_call.1} parent=1 // pred_check
      _
    $region23: #{tpu_custom_call.1} parent=1 // pred_check_branch
      %45 = sbr.rel (0) target = $region25
    $region24: #{tpu_custom_call.1} parent=1 // pred_region
      %47 = dma.done [#allocation6], 128
    $region25: #{tpu_custom_call.1} parent=1 // pred_fallthru
      _
    %v48 = vld [vmem:[#allocation2] sm:$0xff]
    %v49 = vld [vmem:[#allocation2 + $0x8] sm:$0xff]
    %v50 = vld [vmem:[#allocation5] sm:$0xff]
    %v51 = vadd.f32 %v48, %v50
    %v52 = vadd.f32 %v49, %v50
    %vm53 = vcmask 261120
    %v54 = vsel %vm53, %v51, 0.0
    %55 = vadd.xlane.f32.xlu0 %v54
    %v56 = vpop.xlane.xlu0 %55
    %v57 = vsel %vm53, %v52, 0.0
    %58 = vadd.xlane.f32.xlu0 %v57
    %v59 = vpop.xlane.xlu0 %58
    %v60 = vrcp.pop 32.0
    %v61 = vmul.f32 32.0, %v60
    %v62 = vsub.f32 1.0, %v61
    %v63 = vmul.f32 %v60, %v62
    %v64 = vadd.f32 %v60, %v63
    %vm65 = vweird.f32 %v60
    %v66 = vsel %vm65, %v60, %v64
    %v67 = vmul.f32 %v56, %v66
    %v68 = vmul.f32 %v59, %v66
    %v69 = vsub.f32 %v51, %v67
    %v70 = vsub.f32 %v52, %v68
    %v71 = vmul.f32 %v69, %v69
    %v72 = vmul.f32 %v70, %v70
    %v73 = vsel %vm53, %v71, 0.0
    %74 = vadd.xlane.f32.xlu0 %v73
    %v75 = vpop.xlane.xlu0 %74
    %v76 = vsel %vm53, %v72, 0.0
    %77 = vadd.xlane.f32.xlu0 %v76
    %v78 = vpop.xlane.xlu0 %77
    %v79 = vmul.f32 %v75, %v66
    %v80 = vmul.f32 %v78, %v66
    %v81 = vadd.f32 %v79, 1e-12
    %v82 = vadd.f32 %v80, 1e-12
    %v83 = vrsqrt.pop %v81
    %v84 = vmul.f32 %v83, %v81
    %v85 = vmul.f32 %v84, %v83
    %v86 = vmul.f32 0.5, %v85
    %v87 = vsub.f32 1.5, %v86
    %v88 = vmul.f32 %v83, %v87
    %vm89 = vweird.f32 %v81
    %vm90 = vweird.f32 %v83
    %vm91 = vmor %vm89, %vm90
    %v92 = vsel %vm91, %v83, %v88
    %v93 = vrsqrt.pop %v82
    %v94 = vmul.f32 %v93, %v82
    %v95 = vmul.f32 %v94, %v93
    %v96 = vmul.f32 0.5, %v95
    %v97 = vsub.f32 1.5, %v96
    %v98 = vmul.f32 %v93, %v97
    %vm99 = vweird.f32 %v82
    %vm100 = vweird.f32 %v93
    %vm101 = vmor %vm99, %vm100
    %v102 = vsel %vm101, %v93, %v98
    %v103 = vmul.f32 %v69, %v92
    %v104 = vmul.f32 %v70, %v102
    %v105 = vld [vmem:[%s2] sm:$0x1]
    %v107 = vperm.slane %v105, 0
    %v109 = vmul.f32 %v107, %v103
    %v110 = vmul.f32 %v107, %v104
    %v111 = vld [vmem:[%s3] sm:$0x1]
    %v113 = vperm.slane %v111, 0
    %v115 = vadd.f32 %v109, %v113
    %v116 = vadd.f32 %v110, %v113
    %117 = vst.msk [vmem:[#allocation7] sm:$0xff] %vm53, %v115
    %118 = vst.msk [vmem:[#allocation7 + $0x8] sm:$0xff] %vm53, %v116
    // Predicated region
    $region26: #{tpu_custom_call.1} parent=1 // pred_check
      _
    $region27: #{tpu_custom_call.1} parent=1 // pred_check_branch
      %120 = sbr.rel (0) target = $region29
    $region28: #{tpu_custom_call.1} parent=1 // pred_region
      %122 = vsyncadd [#allocation4], 0
      %s123 = sshll.u32 [#allocation7], 4
      %s124 = int_to_ptr.vmem [resolvable:$true] %s123
      %s125 = sshll.u32 %s4, 4
      %s126 = int_to_ptr.hbm [resolvable:$true] %s125
      %131 = dma.vmem_to_hbm [thread:$0]  %s124, 256, %s126, [#allocation4], 128, 128, 8
    $region29: #{tpu_custom_call.1} parent=1 // pred_fallthru
      _
    // Predicated region
    $region30: #{tpu_custom_call.1} parent=1 // pred_check
      _
    $region31: #{tpu_custom_call.1} parent=1 // pred_check_branch
      %133 = sbr.rel (0) target = $region33
    $region32: #{tpu_custom_call.1} parent=1 // pred_region
      %135 = dma.done [#allocation4], 256
    $region33: #{tpu_custom_call.1} parent=1 // pred_fallthru
      _
    %136 = vsyncpa [#allocation3], 1
    %137 = vsyncpa [#allocation6], 1
    %138 = vsyncpa [#allocation4], 1

</llo_original>
